<compile_context>
chip_gen: v6e
topology: v6e:2x2x1
jax: 0.10.0
libtpu: 0.0.40
codegen_flags: <defaults>
</compile_context>

<pallas_src>
import functools

import jax
import jax.numpy as jnp
from jax.experimental import pallas as pl
from jax.experimental.pallas import tpu as pltpu


def mlp_value_kernel(r_ref, t_ref,
                     w0r_ref, w0t_ref, b0_ref,
                     w1_ref, b1_ref, w2_ref, b2_ref, w3_ref, b3_ref,
                     wh_ref, bh_ref,
                     out_ref):
    """One batch tile through the whole MLP; weights are VMEM-resident."""
    # Stump, with the concat folded into a split contraction:
    #   [ranges | tp] @ W0 == ranges @ W0[:D] + tp @ W0[D:]
    h = jnp.dot(r_ref[...], w0r_ref[...], preferred_element_type=jnp.float32)
    h = h + jnp.dot(t_ref[...], w0t_ref[...], preferred_element_type=jnp.float32)
    h = jnp.maximum(h + b0_ref[...], 0.0)

    # Body: three Linear+ReLU layers (static Python loop -> fully unrolled).
    for w_ref, b_ref in ((w1_ref, b1_ref), (w2_ref, b2_ref), (w3_ref, b3_ref)):
        h = jnp.dot(h.astype(w_ref.dtype), w_ref[...],
                    preferred_element_type=jnp.float32)
        h = jnp.maximum(h + b_ref[...], 0.0)

    # Head: Linear only. num_actions equals the full output last dim, so the
    # out block is lane-legal without extra padding.
    out = jnp.dot(h.astype(wh_ref.dtype), wh_ref[...],
                  preferred_element_type=jnp.float32) + bh_ref[...]
    out_ref[...] = out.astype(out_ref.dtype)


def prepare_params(params, *, target_point_dim=2, compute_dtype=jnp.float32):
    """One-time conversion of PyTorch-layout params to the kernel layout.

    params: list of (W, b) with W shape (out, in), b shape (out,)  [PyTorch].
    Returns (W0_ranges, W0_tp, b0, W1, b1, W2, b2, W3, b3, Wh, bh) with weights
    transposed to (in, out) and cast to compute_dtype; biases stay float32 as
    (1, out) rows for broadcast.
    """
    (w0, b0), *rest = params
    w0 = jnp.asarray(w0, jnp.float32).T                      # (D + tp_dim, H0)
    flat = [w0[:-target_point_dim].astype(compute_dtype),    # (D, H0)
            w0[-target_point_dim:].astype(compute_dtype),    # (tp_dim, H0)
            jnp.asarray(b0, jnp.float32)[None, :]]
    for w, b in rest:
        flat.append(jnp.asarray(w, jnp.float32).T.astype(compute_dtype))
        flat.append(jnp.asarray(b, jnp.float32)[None, :])
    return tuple(flat)


def mlp_value_estimator(ranges, target_points, target_points_activation_map,
                        flat_params, *, b_tile_max=1024):
    """Forward pass. flat_params comes from prepare_params (done once)."""
    del target_points_activation_map  # unused in the reference forward
    (w0r, w0t, b0, w1, b1, w2, b2, w3, b3, wh, bh) = flat_params
    compute_dtype = w0r.dtype
    B, D = ranges.shape[0], ranges.shape[-1]
    T = target_points.shape[-1]
    A = wh.shape[-1]

    # (B, 1, D) -> (B, D): dropping a size-1 middle dim is a free reshape
    # (no concat, so no extra HBM round trip of the dominant input tensor).
    r2 = ranges.reshape(B, D).astype(compute_dtype)
    tp = target_points.astype(compute_dtype)

    # Batch tile: single full-extent block for small B (satisfies the (8,128)
    # rule via "equal full dim"), else 1024-row tiles (divisible by 8).
    b_tile = B if B <= b_tile_max else b_tile_max
    grid = (pl.cdiv(B, b_tile),)

    def row_spec(cols):
        return pl.BlockSpec((b_tile, cols), lambda i: (i, 0))

    def const_spec(arr):
        # Full-shape block + constant index_map -> DMA'd once, stays resident.
        return pl.BlockSpec(arr.shape, lambda i: (0, 0))

    flops = 2 * B * (D * w0r.shape[1] + T * w0t.shape[1]
                     + w1.shape[0] * w1.shape[1] + w2.shape[0] * w2.shape[1]
                     + w3.shape[0] * w3.shape[1] + wh.shape[0] * wh.shape[1])
    bytes_accessed = int(r2.size * r2.dtype.itemsize
                         + tp.size * tp.dtype.itemsize
                         + sum(p.size * p.dtype.itemsize for p in flat_params)
                         + B * A * 4)

    return pl.pallas_call(
        mlp_value_kernel,
        out_shape=jax.ShapeDtypeStruct((B, A), jnp.float32),
        grid=grid,
        in_specs=[row_spec(D), row_spec(T)] + [const_spec(p) for p in flat_params],
        out_specs=pl.BlockSpec((b_tile, A), lambda i: (i, 0)),
        compiler_params=pltpu.CompilerParams(dimension_semantics=("parallel",)),
        cost_estimate=pl.CostEstimate(flops=flops, transcendentals=0,
                                      bytes_accessed=bytes_accessed),
    )(r2, tp, *flat_params)


def _reference_forward(ranges, target_points, params):
    """Plain-JAX reference mirroring the PyTorch module, for verification."""
    x = jnp.concatenate([ranges[:, 0, :], target_points], axis=1)
    for w, b in params[:-1]:
        x = jnp.maximum(x @ w.T + b, 0.0)
    wh, bh = params[-1]
    return x @ wh.T + bh


if __name__ == "__main__":
    key = jax.random.PRNGKey(0)

    # Small shapes consistent with the module.
    B = 2
    state_dim = 14            # state_shape = (1, 14); each ranges entry is (1, 14)
    target_point_dim = 2
    body_fets = (64, 32, 16, 8)
    num_actions = 3

    # Deterministic parameter init (PyTorch Linear shapes: W (out, in), b (out,)).
    dims = [state_dim + target_point_dim] + list(body_fets) + [num_actions]
    params = []
    for din, dout in zip(dims, dims[1:]):
        key, kw, kb = jax.random.split(key, 3)
        bound = din ** -0.5
        w = jax.random.uniform(kw, (dout, din), jnp.float32, -bound, bound)
        b = jax.random.uniform(kb, (dout,), jnp.float32, -bound, bound)
        params.append((w, b))

    # Deterministic example inputs.
    key, k1, k2, k3 = jax.random.split(key, 4)
    ranges = jax.random.normal(k1, (B, 1, state_dim), jnp.float32)
    target_points = jax.random.normal(k2, (B, target_point_dim), jnp.float32)
    activation_map = jax.random.normal(k3, (B, 8, 8), jnp.float32)  # unused in forward

    forward = jax.jit(mlp_value_estimator, static_argnames=("b_tile_max",))

    # --- f32 path: exact semantics of the PyTorch module --------------------
    flat_f32 = prepare_params(params, target_point_dim=target_point_dim)
    out = jax.block_until_ready(forward(ranges, target_points, activation_map, flat_f32))
    assert out.shape == (B, num_actions), out.shape
    ref = _reference_forward(ranges, target_points, params)
    assert jnp.allclose(out, ref, atol=1e-5, rtol=1e-5), (out, ref)

    # --- multi-tile grid + partial last block (still small shapes) ----------
    B2 = 20
    key, k4, k5 = jax.random.split(key, 3)
    ranges2 = jax.random.normal(k4, (B2, 1, state_dim), jnp.float32)
    tp2 = jax.random.normal(k5, (B2, target_point_dim), jnp.float32)
    am2 = jnp.zeros((B2, 8, 8), jnp.float32)
    out2 = jax.block_until_ready(forward(ranges2, tp2, am2, flat_f32, b_tile_max=8))
    ref2 = _reference_forward(ranges2, tp2, params)
    assert out2.shape == (B2, num_actions), out2.shape
    assert jnp.allclose(out2, ref2, atol=1e-5, rtol=1e-5), (out2, ref2)

    # --- optional bf16-input path (mem-bound recommendation for v6e/v7x) ----
    flat_bf16 = prepare_params(params, target_point_dim=target_point_dim,
                               compute_dtype=jnp.bfloat16)
    out_bf16 = jax.block_until_ready(
        forward(ranges, target_points, activation_map, flat_bf16))
    assert out_bf16.shape == (B, num_actions), out_bf16.shape
    assert jnp.allclose(out_bf16, ref, atol=2e-1, rtol=2e-1), (out_bf16, ref)

    print("KERNEL_OK")
</pallas_src>

<mosaic_0001>
module attributes {stable_mosaic.version = 11 : i64} {
  func.func @mlp_value_kernel(%arg0: i32, %arg1: memref<2x14xf32, #tpu.memory_space<vmem>>, %arg2: memref<2x2xf32, #tpu.memory_space<vmem>>, %arg3: memref<14x64xf32, #tpu.memory_space<vmem>>, %arg4: memref<2x64xf32, #tpu.memory_space<vmem>>, %arg5: memref<1x64xf32, #tpu.memory_space<vmem>>, %arg6: memref<64x32xf32, #tpu.memory_space<vmem>>, %arg7: memref<1x32xf32, #tpu.memory_space<vmem>>, %arg8: memref<32x16xf32, #tpu.memory_space<vmem>>, %arg9: memref<1x16xf32, #tpu.memory_space<vmem>>, %arg10: memref<16x8xf32, #tpu.memory_space<vmem>>, %arg11: memref<1x8xf32, #tpu.memory_space<vmem>>, %arg12: memref<8x3xf32, #tpu.memory_space<vmem>>, %arg13: memref<1x3xf32, #tpu.memory_space<vmem>>, %arg14: memref<2x3xf32, #tpu.memory_space<vmem>>) attributes {dimension_semantics = [#tpu.dimension_semantics<parallel>], iteration_bounds = array<i64: 1>, scalar_prefetch = 0 : i64, scratch_operands = 0 : i64, tpu.core_type = #tpu.core_type<tc>, window_params = [{transform_indices = @transform_0, window_bounds = array<i64: 2, 14>}, {transform_indices = @transform_1, window_bounds = array<i64: 2, 2>}, {pipeline_mode = #tpu.pipeline_mode<synchronous>, transform_indices = @transform_2, window_bounds = array<i64: 14, 64>}, {pipeline_mode = #tpu.pipeline_mode<synchronous>, transform_indices = @transform_3, window_bounds = array<i64: 2, 64>}, {pipeline_mode = #tpu.pipeline_mode<synchronous>, transform_indices = @transform_4, window_bounds = array<i64: 1, 64>}, {pipeline_mode = #tpu.pipeline_mode<synchronous>, transform_indices = @transform_5, window_bounds = array<i64: 64, 32>}, {pipeline_mode = #tpu.pipeline_mode<synchronous>, transform_indices = @transform_6, window_bounds = array<i64: 1, 32>}, {pipeline_mode = #tpu.pipeline_mode<synchronous>, transform_indices = @transform_7, window_bounds = array<i64: 32, 16>}, {pipeline_mode = #tpu.pipeline_mode<synchronous>, transform_indices = @transform_8, window_bounds = array<i64: 1, 16>}, {pipeline_mode = #tpu.pipeline_mode<synchronous>, transform_indices = @transform_9, window_bounds = array<i64: 16, 8>}, {pipeline_mode = #tpu.pipeline_mode<synchronous>, transform_indices = @transform_10, window_bounds = array<i64: 1, 8>}, {pipeline_mode = #tpu.pipeline_mode<synchronous>, transform_indices = @transform_11, window_bounds = array<i64: 8, 3>}, {pipeline_mode = #tpu.pipeline_mode<synchronous>, transform_indices = @transform_12, window_bounds = array<i64: 1, 3>}, {transform_indices = @transform_13, window_bounds = array<i64: 2, 3>}]} {
    %c0 = arith.constant 0 : index
    %c0_0 = arith.constant 0 : index
    %0 = vector.load %arg1[%c0, %c0_0] : memref<2x14xf32, #tpu.memory_space<vmem>>, vector<2x14xf32>
    %c0_1 = arith.constant 0 : index
    %c0_2 = arith.constant 0 : index
    %1 = vector.load %arg3[%c0_1, %c0_2] : memref<14x64xf32, #tpu.memory_space<vmem>>, vector<14x64xf32>
    %cst = arith.constant dense<0.000000e+00> : vector<2x64xf32>
    %2 = tpu.matmul %0, %1, %cst {dimension_numbers = #tpu.dot_dimension_numbers<[1], [0], [0], [1], [0, 0, 1, 1], [], []>} : vector<2x14xf32>, vector<14x64xf32>, vector<2x64xf32> -> vector<2x64xf32>
    %c0_3 = arith.constant 0 : index
    %c0_4 = arith.constant 0 : index
    %3 = vector.load %arg2[%c0_3, %c0_4] : memref<2x2xf32, #tpu.memory_space<vmem>>, vector<2x2xf32>
    %c0_5 = arith.constant 0 : index
    %c0_6 = arith.constant 0 : index
    %4 = vector.load %arg4[%c0_5, %c0_6] : memref<2x64xf32, #tpu.memory_space<vmem>>, vector<2x64xf32>
    %cst_7 = arith.constant dense<0.000000e+00> : vector<2x64xf32>
    %5 = tpu.matmul %3, %4, %cst_7 {dimension_numbers = #tpu.dot_dimension_numbers<[1], [0], [0], [1], [0, 0, 1, 1], [], []>} : vector<2x2xf32>, vector<2x64xf32>, vector<2x64xf32> -> vector<2x64xf32>
    %6 = arith.addf %2, %5 : vector<2x64xf32>
    %c0_8 = arith.constant 0 : index
    %c0_9 = arith.constant 0 : index
    %7 = vector.load %arg5[%c0_8, %c0_9] : memref<1x64xf32, #tpu.memory_space<vmem>>, vector<1x64xf32>
    %8 = vector.broadcast %7 : vector<1x64xf32> to vector<2x64xf32>
    %9 = arith.addf %6, %8 : vector<2x64xf32>
    %cst_10 = arith.constant 0.000000e+00 : f32
    %10 = vector.broadcast %cst_10 : f32 to vector<2x64xf32>
    %11 = arith.maximumf %9, %10 : vector<2x64xf32>
    %c0_11 = arith.constant 0 : index
    %c0_12 = arith.constant 0 : index
    %12 = vector.load %arg6[%c0_11, %c0_12] : memref<64x32xf32, #tpu.memory_space<vmem>>, vector<64x32xf32>
    %cst_13 = arith.constant dense<0.000000e+00> : vector<2x32xf32>
    %13 = tpu.matmul %11, %12, %cst_13 {dimension_numbers = #tpu.dot_dimension_numbers<[1], [0], [0], [1], [0, 0, 1, 1], [], []>} : vector<2x64xf32>, vector<64x32xf32>, vector<2x32xf32> -> vector<2x32xf32>
    %c0_14 = arith.constant 0 : index
    %c0_15 = arith.constant 0 : index
    %14 = vector.load %arg7[%c0_14, %c0_15] : memref<1x32xf32, #tpu.memory_space<vmem>>, vector<1x32xf32>
    %15 = vector.broadcast %14 : vector<1x32xf32> to vector<2x32xf32>
    %16 = arith.addf %13, %15 : vector<2x32xf32>
    %cst_16 = arith.constant 0.000000e+00 : f32
    %17 = vector.broadcast %cst_16 : f32 to vector<2x32xf32>
    %18 = arith.maximumf %16, %17 : vector<2x32xf32>
    %c0_17 = arith.constant 0 : index
    %c0_18 = arith.constant 0 : index
    %19 = vector.load %arg8[%c0_17, %c0_18] : memref<32x16xf32, #tpu.memory_space<vmem>>, vector<32x16xf32>
    %cst_19 = arith.constant dense<0.000000e+00> : vector<2x16xf32>
    %20 = tpu.matmul %18, %19, %cst_19 {dimension_numbers = #tpu.dot_dimension_numbers<[1], [0], [0], [1], [0, 0, 1, 1], [], []>} : vector<2x32xf32>, vector<32x16xf32>, vector<2x16xf32> -> vector<2x16xf32>
    %c0_20 = arith.constant 0 : index
    %c0_21 = arith.constant 0 : index
    %21 = vector.load %arg9[%c0_20, %c0_21] : memref<1x16xf32, #tpu.memory_space<vmem>>, vector<1x16xf32>
    %22 = vector.broadcast %21 : vector<1x16xf32> to vector<2x16xf32>
    %23 = arith.addf %20, %22 : vector<2x16xf32>
    %cst_22 = arith.constant 0.000000e+00 : f32
    %24 = vector.broadcast %cst_22 : f32 to vector<2x16xf32>
    %25 = arith.maximumf %23, %24 : vector<2x16xf32>
    %c0_23 = arith.constant 0 : index
    %c0_24 = arith.constant 0 : index
    %26 = vector.load %arg10[%c0_23, %c0_24] : memref<16x8xf32, #tpu.memory_space<vmem>>, vector<16x8xf32>
    %cst_25 = arith.constant dense<0.000000e+00> : vector<2x8xf32>
    %27 = tpu.matmul %25, %26, %cst_25 {dimension_numbers = #tpu.dot_dimension_numbers<[1], [0], [0], [1], [0, 0, 1, 1], [], []>} : vector<2x16xf32>, vector<16x8xf32>, vector<2x8xf32> -> vector<2x8xf32>
    %c0_26 = arith.constant 0 : index
    %c0_27 = arith.constant 0 : index
    %28 = vector.load %arg11[%c0_26, %c0_27] : memref<1x8xf32, #tpu.memory_space<vmem>>, vector<1x8xf32>
    %29 = vector.broadcast %28 : vector<1x8xf32> to vector<2x8xf32>
    %30 = arith.addf %27, %29 : vector<2x8xf32>
    %cst_28 = arith.constant 0.000000e+00 : f32
    %31 = vector.broadcast %cst_28 : f32 to vector<2x8xf32>
    %32 = arith.maximumf %30, %31 : vector<2x8xf32>
    %c0_29 = arith.constant 0 : index
    %c0_30 = arith.constant 0 : index
    %33 = vector.load %arg12[%c0_29, %c0_30] : memref<8x3xf32, #tpu.memory_space<vmem>>, vector<8x3xf32>
    %cst_31 = arith.constant dense<0.000000e+00> : vector<2x3xf32>
    %34 = tpu.matmul %32, %33, %cst_31 {dimension_numbers = #tpu.dot_dimension_numbers<[1], [0], [0], [1], [0, 0, 1, 1], [], []>} : vector<2x8xf32>, vector<8x3xf32>, vector<2x3xf32> -> vector<2x3xf32>
    %c0_32 = arith.constant 0 : index
    %c0_33 = arith.constant 0 : index
    %35 = vector.load %arg13[%c0_32, %c0_33] : memref<1x3xf32, #tpu.memory_space<vmem>>, vector<1x3xf32>
    %36 = vector.broadcast %35 : vector<1x3xf32> to vector<2x3xf32>
    %37 = arith.addf %34, %36 : vector<2x3xf32>
    %c0_34 = arith.constant 0 : index
    %c0_35 = arith.constant 0 : index
    %38 = vector.load %arg14[%c0_34, %c0_35] : memref<2x3xf32, #tpu.memory_space<vmem>>, vector<2x3xf32>
    tpu.vector_store %arg14[%c0_34, %c0_35], %37 {strides = array<i32>} : memref<2x3xf32, #tpu.memory_space<vmem>>, vector<2x3xf32>,
    return
  }
  func.func @transform_0(%arg0: i32) -> (i32, i32) {
    %c0_i32 = arith.constant 0 : i32
    %c0_i32_0 = arith.constant 0 : i32
    return %arg0, %c0_i32 : i32, i32
  }
  func.func @transform_1(%arg0: i32) -> (i32, i32) {
    %c0_i32 = arith.constant 0 : i32
    %c0_i32_0 = arith.constant 0 : i32
    return %arg0, %c0_i32 : i32, i32
  }
  func.func @transform_2(%arg0: i32) -> (i32, i32) {
    %c0_i32 = arith.constant 0 : i32
    %c0_i32_0 = arith.constant 0 : i32
    %c0_i32_1 = arith.constant 0 : i32
    return %c0_i32, %c0_i32_0 : i32, i32
  }
  func.func @transform_3(%arg0: i32) -> (i32, i32) {
    %c0_i32 = arith.constant 0 : i32
    %c0_i32_0 = arith.constant 0 : i32
    %c0_i32_1 = arith.constant 0 : i32
    return %c0_i32, %c0_i32_0 : i32, i32
  }
  func.func @transform_4(%arg0: i32) -> (i32, i32) {
    %c0_i32 = arith.constant 0 : i32
    %c0_i32_0 = arith.constant 0 : i32
    %c0_i32_1 = arith.constant 0 : i32
    return %c0_i32, %c0_i32_0 : i32, i32
  }
  func.func @transform_5(%arg0: i32) -> (i32, i32) {
    %c0_i32 = arith.constant 0 : i32
    %c0_i32_0 = arith.constant 0 : i32
    %c0_i32_1 = arith.constant 0 : i32
    return %c0_i32, %c0_i32_0 : i32, i32
  }
  func.func @transform_6(%arg0: i32) -> (i32, i32) {
    %c0_i32 = arith.constant 0 : i32
    %c0_i32_0 = arith.constant 0 : i32
    %c0_i32_1 = arith.constant 0 : i32
    return %c0_i32, %c0_i32_0 : i32, i32
  }
  func.func @transform_7(%arg0: i32) -> (i32, i32) {
    %c0_i32 = arith.constant 0 : i32
    %c0_i32_0 = arith.constant 0 : i32
    %c0_i32_1 = arith.constant 0 : i32
    return %c0_i32, %c0_i32_0 : i32, i32
  }
  func.func @transform_8(%arg0: i32) -> (i32, i32) {
    %c0_i32 = arith.constant 0 : i32
    %c0_i32_0 = arith.constant 0 : i32
    %c0_i32_1 = arith.constant 0 : i32
    return %c0_i32, %c0_i32_0 : i32, i32
  }
  func.func @transform_9(%arg0: i32) -> (i32, i32) {
    %c0_i32 = arith.constant 0 : i32
    %c0_i32_0 = arith.constant 0 : i32
    %c0_i32_1 = arith.constant 0 : i32
    return %c0_i32, %c0_i32_0 : i32, i32
  }
  func.func @transform_10(%arg0: i32) -> (i32, i32) {
    %c0_i32 = arith.constant 0 : i32
    %c0_i32_0 = arith.constant 0 : i32
    %c0_i32_1 = arith.constant 0 : i32
    return %c0_i32, %c0_i32_0 : i32, i32
  }
  func.func @transform_11(%arg0: i32) -> (i32, i32) {
    %c0_i32 = arith.constant 0 : i32
    %c0_i32_0 = arith.constant 0 : i32
    %c0_i32_1 = arith.constant 0 : i32
    return %c0_i32, %c0_i32_0 : i32, i32
  }
  func.func @transform_12(%arg0: i32) -> (i32, i32) {
    %c0_i32 = arith.constant 0 : i32
    %c0_i32_0 = arith.constant 0 : i32
    %c0_i32_1 = arith.constant 0 : i32
    return %c0_i32, %c0_i32_0 : i32, i32
  }
  func.func @transform_13(%arg0: i32) -> (i32, i32) {
    %c0_i32 = arith.constant 0 : i32
    %c0_i32_0 = arith.constant 0 : i32
    return %arg0, %c0_i32 : i32, i32
  }
}

</mosaic_0001>

<llo_original>
// kernel: mlp_value_estimator.1
$region0: #{mlp_value_estimator.1}
  #allocation0 [shape = 'u32[]', space=smem, size = 0x4, offset = 0x4, fixed_abs, tag = 'smem constant byte address 0x4 - core index']
  #allocation1 [shape = 'u32[144,128]{1,0:T(1,128)}', space=vmem, size = 0x12000, scoped, tag = 'internal scratch']
  %s0 = inlined_call_operand.vmem [shape: f32[2,14], index: 0, kind: input, shape index: {}]
  %s1 = inlined_call_operand.vmem [shape: f32[2,2], index: 1, kind: input, shape index: {}]
  %s2 = inlined_call_operand.vmem [shape: f32[14,64], index: 2, kind: input, shape index: {}]
  %s3 = inlined_call_operand.vmem [shape: f32[2,64], index: 3, kind: input, shape index: {}]
  %s4 = inlined_call_operand.vmem [shape: f32[1,64], index: 4, kind: input, shape index: {}]
  %s5 = inlined_call_operand.vmem [shape: f32[64,32], index: 5, kind: input, shape index: {}]
  %s6 = inlined_call_operand.vmem [shape: f32[1,32], index: 6, kind: input, shape index: {}]
  %s7 = inlined_call_operand.vmem [shape: f32[32,16], index: 7, kind: input, shape index: {}]
  %s8 = inlined_call_operand.vmem [shape: f32[1,16], index: 8, kind: input, shape index: {}]
  %s9 = inlined_call_operand.vmem [shape: f32[16,8], index: 9, kind: input, shape index: {}]
  %s10 = inlined_call_operand.vmem [shape: f32[1,8], index: 10, kind: input, shape index: {}]
  %s11 = inlined_call_operand.vmem [shape: f32[8,3], index: 11, kind: input, shape index: {}]
  %s12 = inlined_call_operand.vmem [shape: f32[1,3], index: 12, kind: input, shape index: {}]
  %s13 = inlined_call_operand.hbm [shape: f32[2,3], index: 13, kind: output, shape index: {}]
  %s14 = sld [smem:[#allocation0]]
  $region62: #{mlp_value_estimator.1} parent=0
    _
  %s16 = ssub.s32 1, %s14
  %s17 = scalar_select 0, %s16, %s14
  $region1: #{mlp_value_estimator.1} parent=0
    #allocation2 [shape = 'u8[1024]{0}', space=vmem, size = 0x400, scoped, tag = 'output window, operand 0, single buffered']
    #allocation3 [shape = 's32[1]{0}', space=sflag, size = 0x4, scoped, tag = 'scoped memory for mlp_value_estimator.1']
    %18 = vsyncpa [#allocation3], 0
    // Predicated region
    $region2: #{mlp_value_estimator.1} parent=1 // pred_check
      _
    $region3: #{mlp_value_estimator.1} parent=1 // pred_check_branch
      %20 = sbr.rel (0) target = $region5
    $region4: #{mlp_value_estimator.1} parent=1 // pred_region
      _
    $region5: #{mlp_value_estimator.1} parent=1 // pred_fallthru
      _
    // Predicated region
    $region6: #{mlp_value_estimator.1} parent=1 // pred_check
      _
    $region7: #{mlp_value_estimator.1} parent=1 // pred_check_branch
      %22 = sbr.rel (0) target = $region9
    $region8: #{mlp_value_estimator.1} parent=1 // pred_region
      _
    $region9: #{mlp_value_estimator.1} parent=1 // pred_fallthru
      _
    // Predicated region
    $region10: #{mlp_value_estimator.1} parent=1 // pred_check
      _
    $region11: #{mlp_value_estimator.1} parent=1 // pred_check_branch
      %24 = sbr.rel (0) target = $region13
    $region12: #{mlp_value_estimator.1} parent=1 // pred_region
      _
    $region13: #{mlp_value_estimator.1} parent=1 // pred_fallthru
      _
    // Predicated region
    $region14: #{mlp_value_estimator.1} parent=1 // pred_check
      _
    $region15: #{mlp_value_estimator.1} parent=1 // pred_check_branch
      %26 = sbr.rel (0) target = $region17
    $region16: #{mlp_value_estimator.1} parent=1 // pred_region
      _
    $region17: #{mlp_value_estimator.1} parent=1 // pred_fallthru
      _
    // Predicated region
    $region18: #{mlp_value_estimator.1} parent=1 // pred_check
      _
    $region19: #{mlp_value_estimator.1} parent=1 // pred_check_branch
      %28 = sbr.rel (0) target = $region21
    $region20: #{mlp_value_estimator.1} parent=1 // pred_region
      _
    $region21: #{mlp_value_estimator.1} parent=1 // pred_fallthru
      _
    // Predicated region
    $region22: #{mlp_value_estimator.1} parent=1 // pred_check
      _
    $region23: #{mlp_value_estimator.1} parent=1 // pred_check_branch
      %30 = sbr.rel (0) target = $region25
    $region24: #{mlp_value_estimator.1} parent=1 // pred_region
      _
    $region25: #{mlp_value_estimator.1} parent=1 // pred_fallthru
      _
    // Predicated region
    $region26: #{mlp_value_estimator.1} parent=1 // pred_check
      _
    $region27: #{mlp_value_estimator.1} parent=1 // pred_check_branch
      %32 = sbr.rel (0) target = $region29
    $region28: #{mlp_value_estimator.1} parent=1 // pred_region
      _
    $region29: #{mlp_value_estimator.1} parent=1 // pred_fallthru
      _
    // Predicated region
    $region30: #{mlp_value_estimator.1} parent=1 // pred_check
      _
    $region31: #{mlp_value_estimator.1} parent=1 // pred_check_branch
      %34 = sbr.rel (0) target = $region33
    $region32: #{mlp_value_estimator.1} parent=1 // pred_region
      _
    $region33: #{mlp_value_estimator.1} parent=1 // pred_fallthru
      _
    // Predicated region
    $region34: #{mlp_value_estimator.1} parent=1 // pred_check
      _
    $region35: #{mlp_value_estimator.1} parent=1 // pred_check_branch
      %36 = sbr.rel (0) target = $region37
    $region36: #{mlp_value_estimator.1} parent=1 // pred_region
      _
    $region37: #{mlp_value_estimator.1} parent=1 // pred_fallthru
      _
    // Predicated region
    $region38: #{mlp_value_estimator.1} parent=1 // pred_check
      _
    $region39: #{mlp_value_estimator.1} parent=1 // pred_check_branch
      %38 = sbr.rel (0) target = $region41
    $region40: #{mlp_value_estimator.1} parent=1 // pred_region
      _
    $region41: #{mlp_value_estimator.1} parent=1 // pred_fallthru
      _
    // Predicated region
    $region42: #{mlp_value_estimator.1} parent=1 // pred_check
      _
    $region43: #{mlp_value_estimator.1} parent=1 // pred_check_branch
      %40 = sbr.rel (0) target = $region45
    $region44: #{mlp_value_estimator.1} parent=1 // pred_region
      _
    $region45: #{mlp_value_estimator.1} parent=1 // pred_fallthru
      _
    // Predicated region
    $region46: #{mlp_value_estimator.1} parent=1 // pred_check
      _
    $region47: #{mlp_value_estimator.1} parent=1 // pred_check_branch
      %42 = sbr.rel (0) target = $region49
    $region48: #{mlp_value_estimator.1} parent=1 // pred_region
      _
    $region49: #{mlp_value_estimator.1} parent=1 // pred_fallthru
      _
    // Predicated region
    $region50: #{mlp_value_estimator.1} parent=1 // pred_check
      _
    $region51: #{mlp_value_estimator.1} parent=1 // pred_check_branch
      %44 = sbr.rel (0) target = $region53
    $region52: #{mlp_value_estimator.1} parent=1 // pred_region
      _
    $region53: #{mlp_value_estimator.1} parent=1 // pred_fallthru
      _
    %v45 = vld [vmem:[%s0] sm:$0x3]
    %v46 = vld [vmem:[%s2] sm:$0xff]
    %v47 = vld [vmem:[%s2 + $0x8] sm:$0x3f]
    %v48 = vld [vmem:[%s1] sm:$0x3]
    %v49 = vld [vmem:[%s3] sm:$0x3]
    %vm50 = vcmask 15360
    %v52 = vsel %vm50, %v48, 0
    %vm54 = vcmask 1041408
    %v56 = vsel %vm54, %v49, 0
    %58 = vmatprep.subr.mxu0 0.0
    %59 = vmatpush1.msra.mxu0 0.0
    %60 = vmatprep.subr.mxu0 0.0
    %61 = vmatpush1.msra.mxu0 0.0
    %62 = vmatprep.subr.mxu0 0.0
    %63 = vmatpush1.msra.mxu0 0.0
    %64 = vmatprep.subr.mxu0 0.0
    %65 = vmatpush1.msra.mxu0 0.0
    %66 = vmatprep.subr.mxu0 0.0
    %67 = vmatpush1.msra.mxu0 0.0
    %68 = vmatprep.subr.mxu0 0.0
    %69 = vmatpush1.msra.mxu0 0.0
    %70 = vmatprep.subr.mxu0 0.0
    %71 = vmatpush1.msra.mxu0 0.0
    %72 = vmatprep.subr.mxu0 0.0
    %73 = vmatpush1.msra.mxu0 0.0
    %74 = vmatprep.subr.mxu0 0.0
    %75 = vmatpush1.msra.mxu0 0.0
    %76 = vmatprep.subr.mxu0 0.0
    %77 = vmatpush1.msra.mxu0 0.0
    %78 = vmatprep.subr.mxu0 0.0
    %79 = vmatpush1.msra.mxu0 0.0
    %80 = vmatprep.subr.mxu0 0.0
    %81 = vmatpush1.msra.mxu0 0.0
    %82 = vmatprep.subr.mxu0 0.0
    %83 = vmatpush1.msra.mxu0 0.0
    %84 = vmatprep.subr.mxu0 0.0
    %85 = vmatpush1.msra.mxu0 0.0
    %86 = vmatprep.subr.mxu0 0.0
    %87 = vmatpush1.msra.mxu0 0.0
    %88 = vmatprep.subr.mxu0 0.0
    %89 = vmatpush1.msra.mxu0 %v56
    %90 = vmatprep.subr.mxu0 0.0
    %91 = vmatpush2.msra.mxu0 0.0
    %92 = vmatprep.subr.mxu0 0.0
    %93 = vmatpush2.msra.mxu0 0.0
    %94 = vmatprep.subr.mxu0 0.0
    %95 = vmatpush2.msra.mxu0 0.0
    %96 = vmatprep.subr.mxu0 0.0
    %97 = vmatpush2.msra.mxu0 0.0
    %98 = vmatprep.subr.mxu0 0.0
    %99 = vmatpush2.msra.mxu0 0.0
    %100 = vmatprep.subr.mxu0 0.0
    %101 = vmatpush2.msra.mxu0 0.0
    %102 = vmatprep.subr.mxu0 0.0
    %103 = vmatpush2.msra.mxu0 0.0
    %104 = vmatprep.subr.mxu0 0.0
    %105 = vmatpush2.msra.mxu0 0.0
    %106 = vmatprep.subr.mxu0 0.0
    %107 = vmatpush2.msra.mxu0 0.0
    %108 = vmatprep.subr.mxu0 0.0
    %109 = vmatpush2.msra.mxu0 0.0
    %110 = vmatprep.subr.mxu0 0.0
    %111 = vmatpush2.msra.mxu0 0.0
    %112 = vmatprep.subr.mxu0 0.0
    %113 = vmatpush2.msra.mxu0 0.0
    %114 = vmatprep.subr.mxu0 0.0
    %115 = vmatpush2.msra.mxu0 0.0
    %116 = vmatprep.subr.mxu0 0.0
    %117 = vmatpush2.msra.mxu0 0.0
    %118 = vmatprep.subr.mxu0 0.0
    %119 = vmatpush2.msra.mxu0 0.0
    %120 = vmatprep.subr.mxu0 0.0
    %121 = vmatpush2.msra.mxu0 0.0
    %122 = vmatprep.mubr.f32.mxu0 0.0
    %123 = vmatmul.mubr.f32.gmra.mxu0 %v52
    %v124 = vpop.f32.mrf.mxu0
    %v125 = vadd.f32 0.0, %v124
    %v126 = vpop.f32.mrf.mxu0
    %127 = vdwg.mxu0
    %vm128 = vcmask 113664
    %v130 = vsel %vm128, %v45, 0
    %vm132 = vcmask 1045504
    %v134 = vsel %vm132, %v47, 0
    %136 = vmatprep.subr.mxu0 0.0
    %137 = vmatpush1.msra.mxu0 0.0
    %138 = vmatprep.subr.mxu0 0.0
    %139 = vmatpush1.msra.mxu0 0.0
    %140 = vmatprep.subr.mxu0 0.0
    %141 = vmatpush1.msra.mxu0 0.0
    %142 = vmatprep.subr.mxu0 0.0
    %143 = vmatpush1.msra.mxu0 0.0
    %144 = vmatprep.subr.mxu0 0.0
    %145 = vmatpush1.msra.mxu0 0.0
    %146 = vmatprep.subr.mxu0 0.0
    %147 = vmatpush1.msra.mxu0 0.0
    %148 = vmatprep.subr.mxu0 0.0
    %149 = vmatpush1.msra.mxu0 0.0
    %150 = vmatprep.subr.mxu0 0.0
    %151 = vmatpush1.msra.mxu0 0.0
    %152 = vmatprep.subr.mxu0 0.0
    %153 = vmatpush1.msra.mxu0 0.0
    %154 = vmatprep.subr.mxu0 0.0
    %155 = vmatpush1.msra.mxu0 0.0
    %156 = vmatprep.subr.mxu0 0.0
    %157 = vmatpush1.msra.mxu0 0.0
    %158 = vmatprep.subr.mxu0 0.0
    %159 = vmatpush1.msra.mxu0 0.0
    %160 = vmatprep.subr.mxu0 0.0
    %161 = vmatpush1.msra.mxu0 0.0
    %162 = vmatprep.subr.mxu0 0.0
    %163 = vmatpush1.msra.mxu0 0.0
    %164 = vmatprep.subr.mxu0 0.0
    %165 = vmatpush1.msra.mxu0 %v134
    %166 = vmatprep.subr.mxu0 0.0
    %167 = vmatpush1.msra.mxu0 %v46
    %168 = vmatprep.subr.mxu0 0.0
    %169 = vmatpush2.msra.mxu0 0.0
    %170 = vmatprep.subr.mxu0 0.0
    %171 = vmatpush2.msra.mxu0 0.0
    %172 = vmatprep.subr.mxu0 0.0
    %173 = vmatpush2.msra.mxu0 0.0
    %174 = vmatprep.subr.mxu0 0.0
    %175 = vmatpush2.msra.mxu0 0.0
    %176 = vmatprep.subr.mxu0 0.0
    %177 = vmatpush2.msra.mxu0 0.0
    %178 = vmatprep.subr.mxu0 0.0
    %179 = vmatpush2.msra.mxu0 0.0
    %180 = vmatprep.subr.mxu0 0.0
    %181 = vmatpush2.msra.mxu0 0.0
    %182 = vmatprep.subr.mxu0 0.0
    %183 = vmatpush2.msra.mxu0 0.0
    %184 = vmatprep.subr.mxu0 0.0
    %185 = vmatpush2.msra.mxu0 0.0
    %186 = vmatprep.subr.mxu0 0.0
    %187 = vmatpush2.msra.mxu0 0.0
    %188 = vmatprep.subr.mxu0 0.0
    %189 = vmatpush2.msra.mxu0 0.0
    %190 = vmatprep.subr.mxu0 0.0
    %191 = vmatpush2.msra.mxu0 0.0
    %192 = vmatprep.subr.mxu0 0.0
    %193 = vmatpush2.msra.mxu0 0.0
    %194 = vmatprep.subr.mxu0 0.0
    %195 = vmatpush2.msra.mxu0 0.0
    %196 = vmatprep.subr.mxu0 0.0
    %197 = vmatpush2.msra.mxu0 0.0
    %198 = vmatprep.subr.mxu0 0.0
    %199 = vmatpush2.msra.mxu0 0.0
    %200 = vmatprep.mubr.f32.mxu0 0.0
    %201 = vmatmul.mubr.f32.gmra.mxu0 %v130
    %v202 = vpop.f32.mrf.mxu0
    %v203 = vadd.f32 %v125, %v202
    %v204 = vpop.f32.mrf.mxu0
    %205 = vdwg.mxu0
    %v206 = vld [vmem:[%s4] sm:$0x1]
    %v208 = vlaneseq
    %v209 = vshrl.u32 %v208, 7
    %v210 = vsub.s32 0, %v209
    %v211 = vrot.slane %v206, %v210
    %v213 = vadd.f32 %v203, %v211
    %v214 = vmax.f32 %v213, 0.0
    %v215 = vld [vmem:[%s5] sm:$0xff]
    %v216 = vld [vmem:[%s5 + $0x8] sm:$0xff]
    %v217 = vld [vmem:[%s5 + $0x10] sm:$0xff]
    %v218 = vld [vmem:[%s5 + $0x18] sm:$0xff]
    %v219 = vld [vmem:[%s5 + $0x20] sm:$0xff]
    %v220 = vld [vmem:[%s5 + $0x28] sm:$0xff]
    %v221 = vld [vmem:[%s5 + $0x30] sm:$0xff]
    %v222 = vld [vmem:[%s5 + $0x38] sm:$0xff]
    %v223 = vld [vmem:[%s6] sm:$0x1]
    %v225 = vlaneseq
    %v226 = vshrl.u32 %v225, 7
    %v227 = vsub.s32 0, %v226
    %v228 = vrot.slane %v223, %v227
    %vm230 = vcmask 523264
    %v232 = vsel %vm230, %v214, 0
    %234 = vmatprep.subr.mxu0 0.0
    %235 = vmatpush1.msra.mxu0 0.0
    %236 = vmatprep.subr.mxu0 0.0
    %237 = vmatpush1.msra.mxu0 0.0
    %238 = vmatprep.subr.mxu0 0.0
    %239 = vmatpush1.msra.mxu0 0.0
    %240 = vmatprep.subr.mxu0 0.0
    %241 = vmatpush1.msra.mxu0 0.0
    %242 = vmatprep.subr.mxu0 0.0
    %243 = vmatpush1.msra.mxu0 0.0
    %244 = vmatprep.subr.mxu0 0.0
    %245 = vmatpush1.msra.mxu0 0.0
    %246 = vmatprep.subr.mxu0 0.0
    %247 = vmatpush1.msra.mxu0 0.0
    %248 = vmatprep.subr.mxu0 0.0
    %249 = vmatpush1.msra.mxu0 0.0
    %250 = vmatprep.subr.mxu0 0.0
    %251 = vmatpush1.msra.mxu0 %v222
    %252 = vmatprep.subr.mxu0 0.0
    %253 = vmatpush1.msra.mxu0 %v221
    %254 = vmatprep.subr.mxu0 0.0
    %255 = vmatpush1.msra.mxu0 %v220
    %256 = vmatprep.subr.mxu0 0.0
    %257 = vmatpush1.msra.mxu0 %v219
    %258 = vmatprep.subr.mxu0 0.0
    %259 = vmatpush1.msra.mxu0 %v218
    %260 = vmatprep.subr.mxu0 0.0
    %261 = vmatpush1.msra.mxu0 %v217
    %262 = vmatprep.subr.mxu0 0.0
    %263 = vmatpush1.msra.mxu0 %v216
    %264 = vmatprep.subr.mxu0 0.0
    %265 = vmatpush1.msra.mxu0 %v215
    %266 = vmatprep.subr.mxu0 0.0
    %267 = vmatpush2.msra.mxu0 0.0
    %268 = vmatprep.subr.mxu0 0.0
    %269 = vmatpush2.msra.mxu0 0.0
    %270 = vmatprep.subr.mxu0 0.0
    %271 = vmatpush2.msra.mxu0 0.0
    %272 = vmatprep.subr.mxu0 0.0
    %273 = vmatpush2.msra.mxu0 0.0
    %274 = vmatprep.subr.mxu0 0.0
    %275 = vmatpush2.msra.mxu0 0.0
    %276 = vmatprep.subr.mxu0 0.0
    %277 = vmatpush2.msra.mxu0 0.0
    %278 = vmatprep.subr.mxu0 0.0
    %279 = vmatpush2.msra.mxu0 0.0
    %280 = vmatprep.subr.mxu0 0.0
    %281 = vmatpush2.msra.mxu0 0.0
    %282 = vmatprep.subr.mxu0 0.0
    %283 = vmatpush2.msra.mxu0 0.0
    %284 = vmatprep.subr.mxu0 0.0
    %285 = vmatpush2.msra.mxu0 0.0
    %286 = vmatprep.subr.mxu0 0.0
    %287 = vmatpush2.msra.mxu0 0.0
    %288 = vmatprep.subr.mxu0 0.0
    %289 = vmatpush2.msra.mxu0 0.0
    %290 = vmatprep.subr.mxu0 0.0
    %291 = vmatpush2.msra.mxu0 0.0
    %292 = vmatprep.subr.mxu0 0.0
    %293 = vmatpush2.msra.mxu0 0.0
    %294 = vmatprep.subr.mxu0 0.0
    %295 = vmatpush2.msra.mxu0 0.0
    %296 = vmatprep.subr.mxu0 0.0
    %297 = vmatpush2.msra.mxu0 0.0
    %298 = vmatprep.mubr.f32.mxu0 0.0
    %299 = vmatmul.mubr.f32.gmra.mxu0 %v232
    %v300 = vpop.f32.mrf.mxu0
    %v301 = vadd.f32 %v228, %v300
    %v302 = vpop.f32.mrf.mxu0
    %303 = vdwg.mxu0
    %v304 = vmax.f32 %v301, 0.0
    %v305 = vld [vmem:[%s7] sm:$0xff]
    %v306 = vld [vmem:[%s7 + $0x8] sm:$0xff]
    %v307 = vld [vmem:[%s7 + $0x10] sm:$0xff]
    %v308 = vld [vmem:[%s7 + $0x18] sm:$0xff]
    %v309 = vld [vmem:[%s8] sm:$0x1]
    %v311 = vlaneseq
    %v312 = vshrl.u32 %v311, 7
    %v313 = vsub.s32 0, %v312
    %v314 = vrot.slane %v309, %v313
    %vm316 = vcmask 261120
    %v318 = vsel %vm316, %v304, 0
    %320 = vmatprep.subr.mxu0 0.0
    %321 = vmatpush1.msra.mxu0 0.0
    %322 = vmatprep.subr.mxu0 0.0
    %323 = vmatpush1.msra.mxu0 0.0
    %324 = vmatprep.subr.mxu0 0.0
    %325 = vmatpush1.msra.mxu0 0.0
    %326 = vmatprep.subr.mxu0 0.0
    %327 = vmatpush1.msra.mxu0 0.0
    %328 = vmatprep.subr.mxu0 0.0
    %329 = vmatpush1.msra.mxu0 0.0
    %330 = vmatprep.subr.mxu0 0.0
    %331 = vmatpush1.msra.mxu0 0.0
    %332 = vmatprep.subr.mxu0 0.0
    %333 = vmatpush1.msra.mxu0 0.0
    %334 = vmatprep.subr.mxu0 0.0
    %335 = vmatpush1.msra.mxu0 0.0
    %336 = vmatprep.subr.mxu0 0.0
    %337 = vmatpush1.msra.mxu0 0.0
    %338 = vmatprep.subr.mxu0 0.0
    %339 = vmatpush1.msra.mxu0 0.0
    %340 = vmatprep.subr.mxu0 0.0
    %341 = vmatpush1.msra.mxu0 0.0
    %342 = vmatprep.subr.mxu0 0.0
    %343 = vmatpush1.msra.mxu0 0.0
    %344 = vmatprep.subr.mxu0 0.0
    %345 = vmatpush1.msra.mxu0 %v308
    %346 = vmatprep.subr.mxu0 0.0
    %347 = vmatpush1.msra.mxu0 %v307
    %348 = vmatprep.subr.mxu0 0.0
    %349 = vmatpush1.msra.mxu0 %v306
    %350 = vmatprep.subr.mxu0 0.0
    %351 = vmatpush1.msra.mxu0 %v305
    %352 = vmatprep.subr.mxu0 0.0
    %353 = vmatpush2.msra.mxu0 0.0
    %354 = vmatprep.subr.mxu0 0.0
    %355 = vmatpush2.msra.mxu0 0.0
    %356 = vmatprep.subr.mxu0 0.0
    %357 = vmatpush2.msra.mxu0 0.0
    %358 = vmatprep.subr.mxu0 0.0
    %359 = vmatpush2.msra.mxu0 0.0
    %360 = vmatprep.subr.mxu0 0.0
    %361 = vmatpush2.msra.mxu0 0.0
    %362 = vmatprep.subr.mxu0 0.0
    %363 = vmatpush2.msra.mxu0 0.0
    %364 = vmatprep.subr.mxu0 0.0
    %365 = vmatpush2.msra.mxu0 0.0
    %366 = vmatprep.subr.mxu0 0.0
    %367 = vmatpush2.msra.mxu0 0.0
    %368 = vmatprep.subr.mxu0 0.0
    %369 = vmatpush2.msra.mxu0 0.0
    %370 = vmatprep.subr.mxu0 0.0
    %371 = vmatpush2.msra.mxu0 0.0
    %372 = vmatprep.subr.mxu0 0.0
    %373 = vmatpush2.msra.mxu0 0.0
    %374 = vmatprep.subr.mxu0 0.0
    %375 = vmatpush2.msra.mxu0 0.0
    %376 = vmatprep.subr.mxu0 0.0
    %377 = vmatpush2.msra.mxu0 0.0
    %378 = vmatprep.subr.mxu0 0.0
    %379 = vmatpush2.msra.mxu0 0.0
    %380 = vmatprep.subr.mxu0 0.0
    %381 = vmatpush2.msra.mxu0 0.0
    %382 = vmatprep.subr.mxu0 0.0
    %383 = vmatpush2.msra.mxu0 0.0
    %384 = vmatprep.mubr.f32.mxu0 0.0
    %385 = vmatmul.mubr.f32.gmra.mxu0 %v318
    %v386 = vpop.f32.mrf.mxu0
    %v387 = vadd.f32 %v314, %v386
    %v388 = vpop.f32.mrf.mxu0
    %389 = vdwg.mxu0
    %v390 = vmax.f32 %v387, 0.0
    %v391 = vld [vmem:[%s9] sm:$0xff]
    %v392 = vld [vmem:[%s9 + $0x8] sm:$0xff]
    %v393 = vld [vmem:[%s10] sm:$0x1]
    %v395 = vlaneseq
    %v396 = vshrl.u32 %v395, 7
    %v397 = vsub.s32 0, %v396
    %v398 = vrot.slane %v393, %v397
    %vm400 = vcmask 130048
    %v402 = vsel %vm400, %v390, 0
    %404 = vmatprep.subr.mxu0 0.0
    %405 = vmatpush1.msra.mxu0 0.0
    %406 = vmatprep.subr.mxu0 0.0
    %407 = vmatpush1.msra.mxu0 0.0
    %408 = vmatprep.subr.mxu0 0.0
    %409 = vmatpush1.msra.mxu0 0.0
    %410 = vmatprep.subr.mxu0 0.0
    %411 = vmatpush1.msra.mxu0 0.0
    %412 = vmatprep.subr.mxu0 0.0
    %413 = vmatpush1.msra.mxu0 0.0
    %414 = vmatprep.subr.mxu0 0.0
    %415 = vmatpush1.msra.mxu0 0.0
    %416 = vmatprep.subr.mxu0 0.0
    %417 = vmatpush1.msra.mxu0 0.0
    %418 = vmatprep.subr.mxu0 0.0
    %419 = vmatpush1.msra.mxu0 0.0
    %420 = vmatprep.subr.mxu0 0.0
    %421 = vmatpush1.msra.mxu0 0.0
    %422 = vmatprep.subr.mxu0 0.0
    %423 = vmatpush1.msra.mxu0 0.0
    %424 = vmatprep.subr.mxu0 0.0
    %425 = vmatpush1.msra.mxu0 0.0
    %426 = vmatprep.subr.mxu0 0.0
    %427 = vmatpush1.msra.mxu0 0.0
    %428 = vmatprep.subr.mxu0 0.0
    %429 = vmatpush1.msra.mxu0 0.0
    %430 = vmatprep.subr.mxu0 0.0
    %431 = vmatpush1.msra.mxu0 0.0
    %432 = vmatprep.subr.mxu0 0.0
    %433 = vmatpush1.msra.mxu0 %v392
    %434 = vmatprep.subr.mxu0 0.0
    %435 = vmatpush1.msra.mxu0 %v391
    %436 = vmatprep.subr.mxu0 0.0
    %437 = vmatpush2.msra.mxu0 0.0
    %438 = vmatprep.subr.mxu0 0.0
    %439 = vmatpush2.msra.mxu0 0.0
    %440 = vmatprep.subr.mxu0 0.0
    %441 = vmatpush2.msra.mxu0 0.0
    %442 = vmatprep.subr.mxu0 0.0
    %443 = vmatpush2.msra.mxu0 0.0
    %444 = vmatprep.subr.mxu0 0.0
    %445 = vmatpush2.msra.mxu0 0.0
    %446 = vmatprep.subr.mxu0 0.0
    %447 = vmatpush2.msra.mxu0 0.0
    %448 = vmatprep.subr.mxu0 0.0
    %449 = vmatpush2.msra.mxu0 0.0
    %450 = vmatprep.subr.mxu0 0.0
    %451 = vmatpush2.msra.mxu0 0.0
    %452 = vmatprep.subr.mxu0 0.0
    %453 = vmatpush2.msra.mxu0 0.0
    %454 = vmatprep.subr.mxu0 0.0
    %455 = vmatpush2.msra.mxu0 0.0
    %456 = vmatprep.subr.mxu0 0.0
    %457 = vmatpush2.msra.mxu0 0.0
    %458 = vmatprep.subr.mxu0 0.0
    %459 = vmatpush2.msra.mxu0 0.0
    %460 = vmatprep.subr.mxu0 0.0
    %461 = vmatpush2.msra.mxu0 0.0
    %462 = vmatprep.subr.mxu0 0.0
    %463 = vmatpush2.msra.mxu0 0.0
    %464 = vmatprep.subr.mxu0 0.0
    %465 = vmatpush2.msra.mxu0 0.0
    %466 = vmatprep.subr.mxu0 0.0
    %467 = vmatpush2.msra.mxu0 0.0
    %468 = vmatprep.mubr.f32.mxu0 0.0
    %469 = vmatmul.mubr.f32.gmra.mxu0 %v402
    %v470 = vpop.f32.mrf.mxu0
    %v471 = vadd.f32 %v398, %v470
    %v472 = vpop.f32.mrf.mxu0
    %473 = vdwg.mxu0
    %v474 = vmax.f32 %v471, 0.0
    %v475 = vld [vmem:[%s11] sm:$0xff]
    %v476 = vld [vmem:[%s12] sm:$0x1]
    %v478 = vlaneseq
    %v479 = vshrl.u32 %v478, 7
    %v480 = vsub.s32 0, %v479
    %v481 = vrot.slane %v476, %v480
    %vm483 = vcmask 64512
    %v485 = vsel %vm483, %v474, 0
    %487 = vmatprep.subr.mxu0 0.0
    %488 = vmatpush1.msra.mxu0 0.0
    %489 = vmatprep.subr.mxu0 0.0
    %490 = vmatpush1.msra.mxu0 0.0
    %491 = vmatprep.subr.mxu0 0.0
    %492 = vmatpush1.msra.mxu0 0.0
    %493 = vmatprep.subr.mxu0 0.0
    %494 = vmatpush1.msra.mxu0 0.0
    %495 = vmatprep.subr.mxu0 0.0
    %496 = vmatpush1.msra.mxu0 0.0
    %497 = vmatprep.subr.mxu0 0.0
    %498 = vmatpush1.msra.mxu0 0.0
    %499 = vmatprep.subr.mxu0 0.0
    %500 = vmatpush1.msra.mxu0 0.0
    %501 = vmatprep.subr.mxu0 0.0
    %502 = vmatpush1.msra.mxu0 0.0
    %503 = vmatprep.subr.mxu0 0.0
    %504 = vmatpush1.msra.mxu0 0.0
    %505 = vmatprep.subr.mxu0 0.0
    %506 = vmatpush1.msra.mxu0 0.0
    %507 = vmatprep.subr.mxu0 0.0
    %508 = vmatpush1.msra.mxu0 0.0
    %509 = vmatprep.subr.mxu0 0.0
    %510 = vmatpush1.msra.mxu0 0.0
    %511 = vmatprep.subr.mxu0 0.0
    %512 = vmatpush1.msra.mxu0 0.0
    %513 = vmatprep.subr.mxu0 0.0
    %514 = vmatpush1.msra.mxu0 0.0
    %515 = vmatprep.subr.mxu0 0.0
    %516 = vmatpush1.msra.mxu0 0.0
    %517 = vmatprep.subr.mxu0 0.0
    %518 = vmatpush1.msra.mxu0 %v475
    %519 = vmatprep.subr.mxu0 0.0
    %520 = vmatpush2.msra.mxu0 0.0
    %521 = vmatprep.subr.mxu0 0.0
    %522 = vmatpush2.msra.mxu0 0.0
    %523 = vmatprep.subr.mxu0 0.0
    %524 = vmatpush2.msra.mxu0 0.0
    %525 = vmatprep.subr.mxu0 0.0
    %526 = vmatpush2.msra.mxu0 0.0
    %527 = vmatprep.subr.mxu0 0.0
    %528 = vmatpush2.msra.mxu0 0.0
    %529 = vmatprep.subr.mxu0 0.0
    %530 = vmatpush2.msra.mxu0 0.0
    %531 = vmatprep.subr.mxu0 0.0
    %532 = vmatpush2.msra.mxu0 0.0
    %533 = vmatprep.subr.mxu0 0.0
    %534 = vmatpush2.msra.mxu0 0.0
    %535 = vmatprep.subr.mxu0 0.0
    %536 = vmatpush2.msra.mxu0 0.0
    %537 = vmatprep.subr.mxu0 0.0
    %538 = vmatpush2.msra.mxu0 0.0
    %539 = vmatprep.subr.mxu0 0.0
    %540 = vmatpush2.msra.mxu0 0.0
    %541 = vmatprep.subr.mxu0 0.0
    %542 = vmatpush2.msra.mxu0 0.0
    %543 = vmatprep.subr.mxu0 0.0
    %544 = vmatpush2.msra.mxu0 0.0
    %545 = vmatprep.subr.mxu0 0.0
    %546 = vmatpush2.msra.mxu0 0.0
    %547 = vmatprep.subr.mxu0 0.0
    %548 = vmatpush2.msra.mxu0 0.0
    %549 = vmatprep.subr.mxu0 0.0
    %550 = vmatpush2.msra.mxu0 0.0
    %551 = vmatprep.mubr.f32.mxu0 0.0
    %552 = vmatmul.mubr.f32.gmra.mxu0 %v485
    %v553 = vpop.f32.mrf.mxu0
    %v554 = vadd.f32 %v481, %v553
    %v555 = vpop.f32.mrf.mxu0
    %556 = vdwg.mxu0
    %vm557 = vcmask 17408
    %558 = vst.msk [vmem:[#allocation2] sm:$0x3] %vm557, %v554
    // Predicated region
    $region54: #{mlp_value_estimator.1} parent=1 // pred_check
      _
    $region55: #{mlp_value_estimator.1} parent=1 // pred_check_branch
      %560 = sbr.rel (0) target = $region57
    $region56: #{mlp_value_estimator.1} parent=1 // pred_region
      %s562 = ssub.s32 32, 32
      %563 = vsyncadd [#allocation3], %s562
      %s565 = sshll.u32 [#allocation2], 4
      %s566 = int_to_ptr.vmem [resolvable:$true] %s565
      %568 = dma.vmem_to_hbm [thread:$0]  %s566, 32, %s13, [#allocation3]
    $region57: #{mlp_value_estimator.1} parent=1 // pred_fallthru
      _
    // Predicated region
    $region58: #{mlp_value_estimator.1} parent=1 // pred_check
      _
    $region59: #{mlp_value_estimator.1} parent=1 // pred_check_branch
      %570 = sbr.rel (0) target = $region61
    $region60: #{mlp_value_estimator.1} parent=1 // pred_region
      %571 = dma.done [#allocation3], 32
    $region61: #{mlp_value_estimator.1} parent=1 // pred_fallthru
      _
    %572 = vsyncpa [#allocation3], 1

</llo_original>
